<compile_context>
chip_gen: v7x
topology: tpu7x:2x2x1
jax: 0.10.0
libtpu: 0.0.40
codegen_flags: <defaults>
</compile_context>

<pallas_src>
import math

import jax
import jax.numpy as jnp
from jax.experimental import pallas as pl
from jax.experimental.pallas import tpu as pltpu

EPS = 1e-5
LANE = 128


# ----------------------------- in-kernel helpers -----------------------------
def _layernorm(x, gamma, beta):
    mu = jnp.mean(x, axis=-1, keepdims=True)
    var = jnp.mean(jnp.square(x - mu), axis=-1, keepdims=True)
    return (x - mu) * jax.lax.rsqrt(var + EPS) * gamma + beta


def _gelu(x):
    # TODO(synk): torch nn.GELU defaults to exact (erf) GELU; tanh approximation
    #             is used here for robust TPU lowering (small numerical drift).
    return jax.nn.gelu(x, approximate=True)


def _bf16(x):
    return x.astype(jnp.bfloat16)


# --------------------------------- kernels -----------------------------------
def _conv_gelu_kernel(p_ref, w_ref, b_ref, o_ref):
    # p_ref: (1, T_out, K*C_in) im2col patches (f32); w_ref: bf16 (K*C_in, C_out).
    acc = jnp.dot(_bf16(p_ref[0]), w_ref[...],
                  preferred_element_type=jnp.float32) + b_ref[...]
    o_ref[0] = _gelu(acc).astype(o_ref.dtype)


def _conv_gelu_ln_proj_kernel(p_ref, w_ref, b_ref, g_ref, beta_ref,
                              pw_ref, pb_ref, o_ref):
    # Last conv layer fused with FeatureProjection: GELU -> LayerNorm -> Linear
    # (dropout_rate = 0.0 -> identity). Weights are pre-cast bf16.
    h = jnp.dot(_bf16(p_ref[0]), w_ref[...],
                preferred_element_type=jnp.float32) + b_ref[...]
    h = _layernorm(_gelu(h), g_ref[...], beta_ref[...])
    y = jnp.dot(_bf16(h), pw_ref[...],
                preferred_element_type=jnp.float32) + pb_ref[...]
    o_ref[0] = y.astype(o_ref.dtype)


def _make_encoder_decoder_kernel(heads, head_dim, n_layers, seq_len):
    """Full encoder stack + linear decoder; grid = (batch, layer)."""
    # KV chunk for the online-softmax loop (largest of 512/256/128 dividing T,
    # else the whole sequence).
    kv_chunk = seq_len
    for c in (512, 256, 128):
        if seq_len % c == 0:
            kv_chunk = c
            break
    n_kv = seq_len // kv_chunk

    def kernel(x_ref, wqkv_ref, bqkv_ref, wo_ref, bo_ref,
               ln1g_ref, ln1b_ref, w1_ref, b1_ref, w2_ref, b2_ref,
               ln2g_ref, ln2b_ref, dec_w_ref, dec_b_ref,
               o_ref, h_ref):
        l = pl.program_id(1)

        # Load projected features into the resident activation scratch once per
        # batch element (start of the layer loop).
        @pl.when(l == 0)
        def _():
            h_ref[...] = x_ref[0].astype(jnp.float32)

        x = h_ref[...]                                   # (T, D) f32
        T, D = x.shape
        xb = _bf16(x)

        # ---- self attention: fused QKV projection (bf16 weights), batched heads.
        # The 1/sqrt(head_dim) scale is already folded into Wq / bq.
        qkv = jnp.dot(xb, wqkv_ref[0],
                      preferred_element_type=jnp.float32) + bqkv_ref[0]   # (T, 3D)
        q = qkv[:, 0 * D:1 * D]
        k = qkv[:, 1 * D:2 * D]
        v = qkv[:, 2 * D:3 * D]

        # TODO(synk): at real shapes use pltpu.einshape / sublane-major heads to
        #             avoid XLU relayouts in the head split/merge below.
        q3 = _bf16(q.reshape(T, heads, head_dim).transpose(1, 0, 2))  # (H, T, hd)
        k3 = _bf16(k.reshape(T, heads, head_dim).transpose(1, 0, 2))
        v3 = _bf16(v.reshape(T, heads, head_dim).transpose(1, 0, 2))

        # Flash-style online softmax over KV chunks: never materializes a full
        # (H, T, T) f32 score tensor; per-chunk P is cast to bf16 only for the
        # PV matmul.
        m_i = jnp.full((heads, T, 1), -jnp.inf, jnp.float32)
        l_i = jnp.zeros((heads, T, 1), jnp.float32)
        acc = jnp.zeros((heads, T, head_dim), jnp.float32)
        for c in range(n_kv):
            ks = k3[:, c * kv_chunk:(c + 1) * kv_chunk, :]
            vs = v3[:, c * kv_chunk:(c + 1) * kv_chunk, :]
            s = jnp.einsum("htd,hsd->hts", q3, ks,
                           preferred_element_type=jnp.float32)        # (H, T, kv)
            m_new = jnp.maximum(m_i, jnp.max(s, axis=-1, keepdims=True))
            alpha = jnp.exp(m_i - m_new)
            p = jnp.exp(s - m_new)
            l_i = alpha * l_i + jnp.sum(p, axis=-1, keepdims=True)
            acc = alpha * acc + jnp.einsum("hts,hsd->htd", _bf16(p), vs,
                                           preferred_element_type=jnp.float32)
            m_i = m_new
        # Normalization on the EUP (reciprocal) instead of a full-width divide.
        ctx = acc * pl.reciprocal(l_i, approx=True)                    # (H, T, hd)
        ctx = ctx.transpose(1, 0, 2).reshape(T, D)
        attn = jnp.dot(_bf16(ctx), wo_ref[0],
                       preferred_element_type=jnp.float32) + bo_ref[0]

        # ---- post-LN residual blocks (dropout = identity) -------------------
        h1 = _layernorm(x + attn, ln1g_ref[0], ln1b_ref[0])
        # TODO(synk): at wav2vec-base shapes tile these FFN matmuls over d_ff.
        ff = _gelu(jnp.dot(_bf16(h1), w1_ref[0],
                           preferred_element_type=jnp.float32) + b1_ref[0])
        ff = jnp.dot(_bf16(ff), w2_ref[0],
                     preferred_element_type=jnp.float32) + b2_ref[0]
        out = _layernorm(h1 + ff, ln2g_ref[0], ln2b_ref[0])
        h_ref[...] = out

        # ---- decoder (Linear d_model -> padded token dim) at the last layer -
        @pl.when(l == n_layers - 1)
        def _():
            y = jnp.dot(_bf16(out), dec_w_ref[...],
                        preferred_element_type=jnp.float32) + dec_b_ref[...]
            o_ref[0] = y.astype(o_ref.dtype)

    return kernel


# ------------------------------ pallas_call glue ------------------------------
def _im2col(x, K, stride):
    """(B, T_in, C_in) -> (B, T_out, K*C_in). Pure layout plumbing (outside kernel)."""
    B, T_in, C_in = x.shape
    T_out = (T_in - K) // stride + 1
    t_idx = jnp.arange(T_out)[:, None] * stride + jnp.arange(K)[None, :]
    patches = x[:, t_idx, :]                              # (B, T_out, K, C_in)
    return patches.reshape(B, T_out, K * C_in)


def _batch_spec(shape):
    nd = len(shape)
    return pl.BlockSpec((1,) + tuple(shape[1:]),
                        lambda *idx, _nd=nd: (idx[0],) + (0,) * (_nd - 1))


def _const_spec(shape):
    nd = len(shape)
    return pl.BlockSpec(tuple(shape), lambda *idx, _nd=nd: (0,) * _nd)


_CONV_VMEM = 32 * 1024 * 1024
_ENC_VMEM = 48 * 1024 * 1024


def conv1d_gelu(x, w_flat, b, K, stride):
    # TODO(synk): at raw-audio lengths tile T_out with a second grid axis.
    B = x.shape[0]
    C_out = w_flat.shape[1]
    patches = _im2col(x, K, stride)
    T_out = patches.shape[1]
    return pl.pallas_call(
        _conv_gelu_kernel,
        out_shape=jax.ShapeDtypeStruct((B, T_out, C_out), jnp.float32),
        grid=(B,),
        in_specs=[_batch_spec(patches.shape), _const_spec(w_flat.shape),
                  _const_spec(b.shape)],
        out_specs=_batch_spec((B, T_out, C_out)),
        compiler_params=pltpu.CompilerParams(dimension_semantics=("parallel",),
                                             vmem_limit_bytes=_CONV_VMEM),
    )(patches, w_flat, b)


def conv1d_gelu_ln_proj(x, w_flat, b, K, stride, g, beta, pw, pb):
    B = x.shape[0]
    patches = _im2col(x, K, stride)
    T_out = patches.shape[1]
    d_model = pw.shape[1]
    return pl.pallas_call(
        _conv_gelu_ln_proj_kernel,
        out_shape=jax.ShapeDtypeStruct((B, T_out, d_model), jnp.float32),
        grid=(B,),
        in_specs=[_batch_spec(patches.shape), _const_spec(w_flat.shape),
                  _const_spec(b.shape), _const_spec(g.shape),
                  _const_spec(beta.shape), _const_spec(pw.shape),
                  _const_spec(pb.shape)],
        out_specs=_batch_spec((B, T_out, d_model)),
        compiler_params=pltpu.CompilerParams(dimension_semantics=("parallel",),
                                             vmem_limit_bytes=_CONV_VMEM),
    )(patches, w_flat, b, g, beta, pw, pb)


def encoder_decoder(x, enc, dec_w, dec_b, heads):
    """One pallas_call: grid (B, L) — layer weights pipelined, activations resident."""
    B, T, D = x.shape
    L = enc["wqkv"].shape[0]
    tok_pad = dec_w.shape[1]

    def lspec(a):
        nd = a.ndim
        return pl.BlockSpec((1,) + tuple(a.shape[1:]),
                            lambda b, l, _nd=nd: (l,) + (0,) * (_nd - 1))

    def cspec(a):
        nd = a.ndim
        return pl.BlockSpec(tuple(a.shape), lambda b, l, _nd=nd: (0,) * _nd)

    weights = [enc[k] for k in ("wqkv", "bqkv", "wo", "bo", "ln1g", "ln1b",
                                "w1", "b1", "w2", "b2", "ln2g", "ln2b")]
    in_specs = ([pl.BlockSpec((1, T, D), lambda b, l: (b, 0, 0))]
                + [lspec(a) for a in weights]
                + [cspec(dec_w), cspec(dec_b)])

    return pl.pallas_call(
        _make_encoder_decoder_kernel(heads, D // heads, L, T),
        out_shape=jax.ShapeDtypeStruct((B, T, tok_pad), jnp.float32),
        grid=(B, L),
        in_specs=in_specs,
        out_specs=pl.BlockSpec((1, T, tok_pad), lambda b, l: (b, 0, 0)),
        scratch_shapes=[pltpu.VMEM((T, D), jnp.float32)],
        compiler_params=pltpu.CompilerParams(
            dimension_semantics=("parallel", "arbitrary"),
            vmem_limit_bytes=_ENC_VMEM),
    )(x, *weights, dec_w, dec_b)


# --------------------------------- parameters ---------------------------------
def init_params(key, token_size, n_layers, d_model, heads,
                conv_dims, kernel_sizes, strides):
    keys = iter(jax.random.split(key, 64))

    def nrm(shape, fan_in):
        return jax.random.normal(next(keys), shape, jnp.float32) / math.sqrt(fan_in)

    z = lambda *s: jnp.zeros(s, jnp.float32)
    o = lambda *s: jnp.ones(s, jnp.float32)

    params = {"token_size": token_size}

    # Conv stack: weights pre-flattened to (K*C_in, C_out) and pre-cast to bf16.
    convs = []
    c_in = 1
    for c_out, k, s in zip(conv_dims, kernel_sizes, strides):
        w = nrm((k, c_in, c_out), k * c_in)
        convs.append({"w": _bf16(w.reshape(k * c_in, c_out)),
                      "b": z(1, c_out), "k": k, "stride": s})
        c_in = c_out
    params["convs"] = convs

    params["proj_ln_g"] = o(1, c_in)
    params["proj_ln_b"] = z(1, c_in)
    params["proj_w"] = _bf16(nrm((c_in, d_model), c_in))
    params["proj_b"] = z(1, d_model)

    d_ff = 4 * d_model
    scale = 1.0 / math.sqrt(d_model // heads)
    enc = {k: [] for k in ("wqkv", "bqkv", "wo", "bo", "ln1g", "ln1b",
                           "w1", "b1", "w2", "b2", "ln2g", "ln2b")}
    for _ in range(n_layers):
        wqkv = nrm((d_model, 3 * d_model), d_model)
        bqkv = z(1, 3 * d_model)
        # Fold the 1/sqrt(head_dim) attention scale into the Q projection
        # (one-time static weight transform).
        wqkv = wqkv.at[:, :d_model].multiply(scale)
        bqkv = bqkv.at[:, :d_model].multiply(scale)
        enc["wqkv"].append(_bf16(wqkv))
        enc["bqkv"].append(bqkv)
        enc["wo"].append(_bf16(nrm((d_model, d_model), d_model)))
        enc["bo"].append(z(1, d_model))
        enc["ln1g"].append(o(1, d_model)); enc["ln1b"].append(z(1, d_model))
        enc["w1"].append(_bf16(nrm((d_model, d_ff), d_model)))
        enc["b1"].append(z(1, d_ff))
        enc["w2"].append(_bf16(nrm((d_ff, d_model), d_ff)))
        enc["b2"].append(z(1, d_model))
        enc["ln2g"].append(o(1, d_model)); enc["ln2b"].append(z(1, d_model))
    params["encoder"] = {k: jnp.stack(v, axis=0) for k, v in enc.items()}

    # TODO(synk): Decoder internals unspecified; implemented as
    #             Linear(d_model -> token_size), padded lane-dense to 128.
    tok_pad = ((token_size + LANE - 1) // LANE) * LANE
    dec_w = nrm((d_model, token_size), d_model)
    dec_b = z(1, token_size)
    params["dec_w"] = _bf16(jnp.pad(dec_w, ((0, 0), (0, tok_pad - token_size))))
    params["dec_b"] = jnp.pad(dec_b, ((0, 0), (0, tok_pad - token_size)))
    return params


# ---------------------------------- forward -----------------------------------
def wav2vec_forward(params, x, heads):
    # torch: x.unsqueeze(1) -> (B, 1, T) NCW; channels-last here: (B, T, 1)
    h = x[:, :, None]
    convs = params["convs"]
    for c in convs[:-1]:                                   # FeatureExtraction
        h = conv1d_gelu(h, c["w"], c["b"], c["k"], c["stride"])
    c = convs[-1]                                          # last conv + FeatureProjection
    h = conv1d_gelu_ln_proj(h, c["w"], c["b"], c["k"], c["stride"],
                            params["proj_ln_g"], params["proj_ln_b"],
                            params["proj_w"], params["proj_b"])

    # Encoder + Decoder fused; token dim is lane-dense (padded) inside the call,
    # sliced back to the real token_size here.
    out = encoder_decoder(h, params["encoder"], params["dec_w"],
                          params["dec_b"], heads)
    return out[..., :params["token_size"]]


if __name__ == "__main__":
    # Small config consistent with Wav2Vec.__init__
    B, T_wav = 2, 80
    token_size, n_layers, d_model, heads = 11, 2, 32, 4
    conv_dims, kernel_sizes, strides = (8, 16), (8, 4), (4, 2)

    key = jax.random.PRNGKey(0)
    pkey, xkey = jax.random.split(key)
    params = init_params(pkey, token_size, n_layers, d_model, heads,
                         conv_dims, kernel_sizes, strides)
    x = jax.random.normal(xkey, (B, T_wav), jnp.float32)

    out = wav2vec_forward(params, x, heads)
    out = jax.block_until_ready(out)

    # expected sequence length after the conv stack
    t = T_wav
    for k, s in zip(kernel_sizes, strides):
        t = (t - k) // s + 1
    assert out.shape == (B, t, token_size), out.shape
    assert bool(jnp.all(jnp.isfinite(out)))
    print("KERNEL_OK")
</pallas_src>

<mosaic_0001>
module attributes {stable_mosaic.version = 11 : i64} {
  func.func @_conv_gelu_kernel(%arg0: i32, %arg1: memref<1x19x8xf32, #tpu.memory_space<vmem>>, %arg2: memref<8x8xbf16, #tpu.memory_space<vmem>>, %arg3: memref<1x8xf32, #tpu.memory_space<vmem>>, %arg4: memref<1x19x8xf32, #tpu.memory_space<vmem>>) attributes {dimension_semantics = [#tpu.dimension_semantics<parallel>], iteration_bounds = array<i64: 2>, scalar_prefetch = 0 : i64, scratch_operands = 0 : i64, tpu.core_type = #tpu.core_type<tc>, window_params = [{transform_indices = @transform_0, window_bounds = array<i64: 1, 19, 8>}, {pipeline_mode = #tpu.pipeline_mode<synchronous>, transform_indices = @transform_1, window_bounds = array<i64: 8, 8>}, {pipeline_mode = #tpu.pipeline_mode<synchronous>, transform_indices = @transform_2, window_bounds = array<i64: 1, 8>}, {transform_indices = @transform_3, window_bounds = array<i64: 1, 19, 8>}]} {
    %c0 = arith.constant 0 : index
    %c0_0 = arith.constant 0 : index
    %c0_1 = arith.constant 0 : index
    %0 = vector.load %arg1[%c0, %c0_0, %c0_1] : memref<1x19x8xf32, #tpu.memory_space<vmem>>, vector<1x19x8xf32>
    %1 = vector.shape_cast %0 : vector<1x19x8xf32> to vector<19x8xf32>
    %2 = arith.truncf %1 : vector<19x8xf32> to vector<19x8xbf16>
    %c0_2 = arith.constant 0 : index
    %c0_3 = arith.constant 0 : index
    %3 = vector.load %arg2[%c0_2, %c0_3] : memref<8x8xbf16, #tpu.memory_space<vmem>>, vector<8x8xbf16>
    %cst = arith.constant dense<0.000000e+00> : vector<19x8xf32>
    %4 = tpu.matmul %2, %3, %cst {dimension_numbers = #tpu.dot_dimension_numbers<[1], [0], [0], [1], [0, 0, 1, 1], [], []>} : vector<19x8xbf16>, vector<8x8xbf16>, vector<19x8xf32> -> vector<19x8xf32>
    %c0_4 = arith.constant 0 : index
    %c0_5 = arith.constant 0 : index
    %5 = vector.load %arg3[%c0_4, %c0_5] : memref<1x8xf32, #tpu.memory_space<vmem>>, vector<1x8xf32>
    %6 = vector.broadcast %5 : vector<1x8xf32> to vector<19x8xf32>
    %7 = arith.addf %4, %6 : vector<19x8xf32>
    %8 = arith.mulf %7, %7 : vector<19x8xf32>
    %9 = arith.mulf %7, %8 : vector<19x8xf32>
    %cst_6 = arith.constant 4.471500e-02 : f32
    %10 = vector.broadcast %cst_6 : f32 to vector<19x8xf32>
    %11 = arith.mulf %10, %9 : vector<19x8xf32>
    %12 = arith.addf %7, %11 : vector<19x8xf32>
    %cst_7 = arith.constant 0.797884583 : f32
    %13 = vector.broadcast %cst_7 : f32 to vector<19x8xf32>
    %14 = arith.mulf %13, %12 : vector<19x8xf32>
    %15 = math.tanh %14 : vector<19x8xf32>
    %cst_8 = arith.constant 1.000000e+00 : f32
    %16 = vector.broadcast %cst_8 : f32 to vector<19x8xf32>
    %17 = arith.addf %16, %15 : vector<19x8xf32>
    %cst_9 = arith.constant 5.000000e-01 : f32
    %18 = vector.broadcast %cst_9 : f32 to vector<19x8xf32>
    %19 = arith.mulf %18, %17 : vector<19x8xf32>
    %20 = arith.mulf %7, %19 : vector<19x8xf32>
    %c0_10 = arith.constant 0 : index
    %c0_11 = arith.constant 0 : index
    %c0_12 = arith.constant 0 : index
    %21 = vector.load %arg4[%c0_10, %c0_11, %c0_12] : memref<1x19x8xf32, #tpu.memory_space<vmem>>, vector<1x19x8xf32>
    %22 = vector.shape_cast %21 : vector<1x19x8xf32> to vector<19x8xf32>
    %23 = vector.shape_cast %20 : vector<19x8xf32> to vector<1x19x8xf32>
    tpu.vector_store %arg4[%c0_10, %c0_11, %c0_12], %23 {strides = array<i32>} : memref<1x19x8xf32, #tpu.memory_space<vmem>>, vector<1x19x8xf32>,
    return
  }
  func.func @transform_0(%arg0: i32) -> (i32, i32, i32) {
    %c0_i32 = arith.constant 0 : i32
    %c0_i32_0 = arith.constant 0 : i32
    %c0_i32_1 = arith.constant 0 : i32
    return %arg0, %c0_i32, %c0_i32_0 : i32, i32, i32
  }
  func.func @transform_1(%arg0: i32) -> (i32, i32) {
    %c0_i32 = arith.constant 0 : i32
    %c0_i32_0 = arith.constant 0 : i32
    %c0_i32_1 = arith.constant 0 : i32
    return %c0_i32, %c0_i32_0 : i32, i32
  }
  func.func @transform_2(%arg0: i32) -> (i32, i32) {
    %c0_i32 = arith.constant 0 : i32
    %c0_i32_0 = arith.constant 0 : i32
    %c0_i32_1 = arith.constant 0 : i32
    return %c0_i32, %c0_i32_0 : i32, i32
  }
  func.func @transform_3(%arg0: i32) -> (i32, i32, i32) {
    %c0_i32 = arith.constant 0 : i32
    %c0_i32_0 = arith.constant 0 : i32
    %c0_i32_1 = arith.constant 0 : i32
    return %arg0, %c0_i32, %c0_i32_0 : i32, i32, i32
  }
}

</mosaic_0001>

<llo_original>
// kernel: tpu_custom_call.1
$region0: #{tpu_custom_call.1}
  #allocation0 [shape = 'u32[]', space=smem, size = 0x4, offset = 0x4, fixed_abs, tag = 'smem constant byte address 0x4 - core index']
  #allocation1 [shape = 'u32[144,128]{1,0:T(1,128)}', space=vmem, size = 0x12000, scoped, tag = 'internal scratch']
  %s0 = inlined_call_operand.vmem [shape: f32[2,19,8], index: 0, kind: input, shape index: {}]
  %s1 = inlined_call_operand.vmem [shape: bf16[8,8], index: 1, kind: input, shape index: {}]
  %s2 = inlined_call_operand.vmem [shape: f32[1,8], index: 2, kind: input, shape index: {}]
  %s3 = inlined_call_operand.vmem [shape: f32[2,19,8], index: 3, kind: output, shape index: {}]
  %s4 = sld [smem:[#allocation0]]
  $region45: #{tpu_custom_call.1} parent=0
    _
  %s6 = ssub.s32 1, %s4
  %s7 = scalar_select 0, %s6, %s4
  loop: start=0, step=1, limit=4
  $region2: #{tpu_custom_call.1} parent=0 // loop_pre_header
    _
  $region3: #{tpu_custom_call.1} parent=0 // loop_header
    %s9 = sphi 0, %s13
    %p10 = scmp.ge.s32.totalorder %s9, 4
    %s19 = sphi 0, %s21
    %s22 = sphi 0, %s19
    %s23 = sphi 0, %s22
    %s39 = sphi 0, %s23
    %s43 = sphi 0, %s43
    %s45 = sphi 0, %s43
    %s46 = sphi 0, %s45
    %s60 = sphi 0, %s46
    %s64 = sphi 0, %s64
    %s66 = sphi 0, %s64
    %s67 = sphi 0, %s66
    %s81 = sphi 0, %s67
    %s87 = sphi 0, %s89
    %s90 = sphi 0, %s87
    %s91 = sphi 0, %s90
    %s107 = sphi 0, %s91
  $region4: #{tpu_custom_call.1} parent=0 // loop_header_branch
    %12 = sbr.rel (%p10) target = $region8
  $region5: #{tpu_custom_call.1} parent=0 // loop_body
    %s14 = ssub.s32 %s9, 1
    %s15 = ssub.s32 %s9, 2
    %s16 = sadd.s32 %s9, 1
    %s17 = ssub.s32 %s9, %s16
    %p18 = scmp.eq.s32.totalorder %s17, 0
    %s20 = sadd.s32 %s19, 1
    %s21 = scalar_select %p18, %s19, %s20
    %p24 = pneg %p18
    %p25 = scmp.eq.s32.totalorder %s9, 1
    %p26 = por %p24, %p25
    %p27 = scmp.ne.s32.totalorder %s19, %s22
    %p28 = scmp.eq.s32.totalorder %s9, 0
    %p29 = por %p27, %p28
    %p30 = scmp.ne.s32.totalorder %s19, %s22
    %p31 = scmp.eq.s32.totalorder %s14, 1
    %p32 = por %p30, %p31
    %p33 = scmp.ne.s32.totalorder %s22, %s23
    %p34 = scmp.eq.s32.totalorder %s14, 0
    %p35 = por %p33, %p34
    %p36 = scmp.ne.s32.totalorder %s22, %s23
    %p37 = scmp.eq.s32.totalorder %s15, 1
    %p38 = por %p36, %p37
    %p40 = scmp.ne.s32.totalorder %s23, %s39
    %p41 = scmp.eq.s32.totalorder %s15, 0
    %p42 = por %p40, %p41
    %s44 = sadd.s32 %s43, 1
    %p47 = scmp.eq.s32.totalorder %s9, 1
    %p48 = scmp.ne.s32.totalorder %s43, %s45
    %p49 = scmp.eq.s32.totalorder %s9, 0
    %p50 = por %p48, %p49
    %p51 = scmp.ne.s32.totalorder %s43, %s45
    %p52 = scmp.eq.s32.totalorder %s14, 1
    %p53 = por %p51, %p52
    %p54 = scmp.ne.s32.totalorder %s45, %s46
    %p55 = scmp.eq.s32.totalorder %s14, 0
    %p56 = por %p54, %p55
    %p57 = scmp.ne.s32.totalorder %s45, %s46
    %p58 = scmp.eq.s32.totalorder %s15, 1
    %p59 = por %p57, %p58
    %p61 = scmp.ne.s32.totalorder %s46, %s60
    %p62 = scmp.eq.s32.totalorder %s15, 0
    %p63 = por %p61, %p62
    %s65 = sadd.s32 %s64, 1
    %p68 = scmp.eq.s32.totalorder %s9, 1
    %p69 = scmp.ne.s32.totalorder %s64, %s66
    %p70 = scmp.eq.s32.totalorder %s9, 0
    %p71 = por %p69, %p70
    %p72 = scmp.ne.s32.totalorder %s64, %s66
    %p73 = scmp.eq.s32.totalorder %s14, 1
    %p74 = por %p72, %p73
    %p75 = scmp.ne.s32.totalorder %s66, %s67
    %p76 = scmp.eq.s32.totalorder %s14, 0
    %p77 = por %p75, %p76
    %p78 = scmp.ne.s32.totalorder %s66, %s67
    %p79 = scmp.eq.s32.totalorder %s15, 1
    %p80 = por %p78, %p79
    %p82 = scmp.ne.s32.totalorder %s67, %s81
    %p83 = scmp.eq.s32.totalorder %s15, 0
    %p84 = por %p82, %p83
    %s85 = ssub.s32 %s9, %s16
    %p86 = scmp.eq.s32.totalorder %s85, 0
    %s88 = sadd.s32 %s87, 1
    %s89 = scalar_select %p86, %s87, %s88
    %p92 = pneg %p86
    %p93 = scmp.eq.s32.totalorder %s9, 1
    %p94 = por %p92, %p93
    %p95 = scmp.ne.s32.totalorder %s87, %s90
    %p96 = scmp.eq.s32.totalorder %s9, 0
    %p97 = por %p95, %p96
    %p98 = scmp.ne.s32.totalorder %s87, %s90
    %p99 = scmp.eq.s32.totalorder %s14, 1
    %p100 = por %p98, %p99
    %p101 = scmp.ne.s32.totalorder %s90, %s91
    %p102 = scmp.eq.s32.totalorder %s14, 0
    %p103 = por %p101, %p102
    %p104 = scmp.ne.s32.totalorder %s90, %s91
    %p105 = scmp.eq.s32.totalorder %s15, 1
    %p106 = por %p104, %p105
    %p108 = scmp.ne.s32.totalorder %s91, %s107
    %p109 = scmp.eq.s32.totalorder %s15, 0
    %p110 = por %p108, %p109
    %p111 = scmp.le.s32.totalorder 1, %s9
    %p112 = scmp.lt.s32.totalorder %s9, 3
    %p113 = pnand %p111, %p112
    %p114 = pneg %p113
    // Predicated region
    $region9: #{tpu_custom_call.1} parent=5 // pred_check
      _
    $region10: #{tpu_custom_call.1} parent=5 // pred_check_branch
      %116 = sbr.rel (%p113) target = $region12
    $region11: #{tpu_custom_call.1} parent=5 // pred_region
      %s117 = ssub.s32 %s9, 1
      // Predicated region
      $region13: #{tpu_custom_call.1} parent=11 // pred_check
        %p118 = pneg %p56
      $region14: #{tpu_custom_call.1} parent=11 // pred_check_branch
        %120 = sbr.rel (%p118) target = $region16
      $region15: #{tpu_custom_call.1} parent=11 // pred_region
        _
      $region16: #{tpu_custom_call.1} parent=11 // pred_fallthru
        _
      // Predicated region
      $region17: #{tpu_custom_call.1} parent=11 // pred_check
        %p121 = pneg %p77
      $region18: #{tpu_custom_call.1} parent=11 // pred_check_branch
        %123 = sbr.rel (%p121) target = $region20
      $region19: #{tpu_custom_call.1} parent=11 // pred_region
        _
      $region20: #{tpu_custom_call.1} parent=11 // pred_fallthru
        _
    $region12: #{tpu_custom_call.1} parent=5 // pred_fallthru
      _
    %p124 = scmp.lt.s32.totalorder %s9, 2
    // Predicated region
    $region21: #{tpu_custom_call.1} parent=5 // pred_check
      %p125 = pneg %p124
    $region22: #{tpu_custom_call.1} parent=5 // pred_check_branch
      %127 = sbr.rel (%p125) target = $region24
    $region23: #{tpu_custom_call.1} parent=5 // pred_region
      // Predicated region
      $region25: #{tpu_custom_call.1} parent=23 // pred_check
        %p128 = pneg %p29
      $region26: #{tpu_custom_call.1} parent=23 // pred_check_branch
        %130 = sbr.rel (%p128) target = $region28
      $region27: #{tpu_custom_call.1} parent=23 // pred_region
        %p131 = scmp.lt.s32.totalorder %s9, 1
        %s132 = scalar_select %p131, %s9, 1
        %s133 = smul.addr %s132, 3
        %s134 = smul.addr %s133, 8
        %s135 = scalar_lea.vmem %s0, %s134
      $region28: #{tpu_custom_call.1} parent=23 // pred_fallthru
        _
    $region24: #{tpu_custom_call.1} parent=5 // pred_fallthru
      _
    %p136 = scmp.le.s32.totalorder 1, %s9
    %p137 = scmp.lt.s32.totalorder %s9, 3
    %p138 = pnand %p136, %p137
    %p139 = pneg %p138
    // Predicated region
    $region29: #{tpu_custom_call.1} parent=5 // pred_check
      _
    $region30: #{tpu_custom_call.1} parent=5 // pred_check_branch
      %141 = sbr.rel (%p138) target = $region32
    $region31: #{tpu_custom_call.1} parent=5 // pred_region
      %s142 = ssub.s32 %s9, 1
      %p143 = scmp.lt.s32.totalorder %s14, 1
      %s144 = scalar_select %p143, %s14, 1
      %s145 = smul.addr %s144, 3
      %s146 = smul.addr %s145, 8
      %s147 = scalar_lea.vmem %s0, %s146
      %p148 = pneg %p35
      %p149 = pneg %p32
      %p150 = pneg %p56
      %p151 = pneg %p53
      %p152 = pneg %p77
      %p153 = pneg %p74
      %p154 = pneg %p103
      %p155 = pneg %p100
      %p156 = scmp.lt.s32.totalorder %s14, 1
      %s157 = scalar_select %p156, %s14, 1
      %s158 = smul.addr %s157, 3
      %s159 = smul.addr %s158, 8
      %s160 = scalar_lea.vmem %s3, %s159
      %p161 = scmp.lt.s32.totalorder %s14, 1
      %s162 = scalar_select %p161, %s14, 1
      %s163 = smul.addr %s162, 3
      %s164 = smul.addr %s163, 8
      %s165 = scalar_lea.vmem %s0, %s164
      %p166 = scmp.lt.s32.totalorder %s14, 1
      %s167 = scalar_select %p166, %s14, 1
      %s168 = smul.addr %s167, 3
      %s169 = smul.addr %s168, 8
      %s170 = scalar_lea.vmem %s3, %s169
      %v172 = vld [vmem:[%s165] sm:$0xff]
      %v173 = vld [vmem:[%s165 + $0x8] sm:$0xff]
      %v174 = vld [vmem:[%s165 + $0x10] sm:$0x7]
      %v175 = vpack.c.bf16 %v173, %v172
      %v176 = vpack.c.bf16 %v174, %v174
      %v177 = vld [vmem:[%s1] sm:$0xf]
      %v178 = vld [vmem:[%s2] sm:$0x1]
      %v180 = vlaneseq
      %v181 = vshrl.u32 %v180, 7
      %v182 = vsub.s32 0, %v181
      %v183 = vrot.slane %v178, %v182
      %vm185 = vcmask 64512
      %v187 = vsel %vm185, %v175, 0
      %v190 = vsel %vm185, %v176, 0
      %vm192 = vcmask 1043456
      %v194 = vsel %vm192, %v177, 0
      %196 = vmatprep.subr.bf16.mxu0 0
      %197 = vmatpush1.bf16.msra.mxu0 %v194
      %198 = vmatprep.subr.bf16.mxu0 0
      %199 = vmatpush1.bf16.msra.mxu0 0
      %200 = vmatprep.subr.bf16.mxu0 0
      %201 = vmatpush1.bf16.msra.mxu0 0
      %202 = vmatprep.subr.bf16.mxu0 0
      %203 = vmatpush1.bf16.msra.mxu0 0
      %204 = vmatprep.subr.bf16.mxu0 0
      %205 = vmatpush1.bf16.msra.mxu0 0
      %206 = vmatprep.subr.bf16.mxu0 0
      %207 = vmatpush1.bf16.msra.mxu0 0
      %208 = vmatprep.subr.bf16.mxu0 0
      %209 = vmatpush1.bf16.msra.mxu0 0
      %210 = vmatprep.subr.bf16.mxu0 0
      %211 = vmatpush1.bf16.msra.mxu0 0
      %212 = vmatprep.subr.bf16.mxu0 0
      %213 = vmatpush1.bf16.msra.mxu0 0
      %214 = vmatprep.subr.bf16.mxu0 0
      %215 = vmatpush1.bf16.msra.mxu0 0
      %216 = vmatprep.subr.bf16.mxu0 0
      %217 = vmatpush1.bf16.msra.mxu0 0
      %218 = vmatprep.subr.bf16.mxu0 0
      %219 = vmatpush1.bf16.msra.mxu0 0
      %220 = vmatprep.subr.bf16.mxu0 0
      %221 = vmatpush1.bf16.msra.mxu0 0
      %222 = vmatprep.subr.bf16.mxu0 0
      %223 = vmatpush1.bf16.msra.mxu0 0
      %224 = vmatprep.subr.bf16.mxu0 0
      %225 = vmatpush1.bf16.msra.mxu0 0
      %226 = vmatprep.subr.bf16.mxu0 0
      %227 = vmatpush1.bf16.msra.mxu0 0
      %228 = vmatprep.mubr.bf16.mxu0 0
      %229 = vmatmul.mubr.bf16.gmra.mrb[0].mxu0 %v187
      %v230 = vpop.f32.mrb[0].mxu0
      %v231 = vadd.f32 %v183, %v230
      %v232 = vpop.f32.mrb[0].mxu0
      %v233 = vpop.f32.mrb[0].mxu0
      %v234 = vadd.f32 %v183, %v233
      %v235 = vpop.f32.mrb[0].mxu0
      %236 = vmatprep.mubr.bf16.mxu0 0
      %237 = vmatmul.mubr.bf16.gmra.mrb[0].mxu0 %v190
      %v238 = vpop.f32.mrb[0].mxu0
      %v239 = vadd.f32 %v183, %v238
      %v240 = vpop.f32.mrb[0].mxu0
      %v241 = vpop.f32.mrb[0].mxu0
      %v242 = vpop.f32.mrb[0].mxu0
      %243 = vdwg.mxu0
      %v244 = vmul.f32 %v231, %v231
      %v245 = vmul.f32 %v234, %v234
      %v246 = vmul.f32 %v239, %v239
      %v247 = vmul.f32 %v231, %v244
      %v248 = vmul.f32 %v234, %v245
      %v249 = vmul.f32 %v239, %v246
      %v250 = vmul.f32 %v247, 0.044715
      %v251 = vmul.f32 %v248, 0.044715
      %v252 = vmul.f32 %v249, 0.044715
      %v253 = vadd.f32 %v231, %v250
      %v254 = vadd.f32 %v234, %v251
      %v255 = vadd.f32 %v239, %v252
      %v256 = vmul.f32 %v253, 0.7978846
      %v257 = vmul.f32 %v254, 0.7978846
      %v258 = vmul.f32 %v255, 0.7978846
      %v259 = vtanh.pop %v256
      %v260 = vtanh.pop %v257
      %v261 = vtanh.pop %v258
      %v262 = vadd.f32 %v259, 1.0
      %v263 = vadd.f32 %v260, 1.0
      %v264 = vadd.f32 %v261, 1.0
      %v265 = vmul.f32 %v262, 0.5
      %v266 = vmul.f32 %v263, 0.5
      %v267 = vmul.f32 %v264, 0.5
      %v268 = vmul.f32 %v231, %v265
      %v269 = vmul.f32 %v234, %v266
      %v270 = vmul.f32 %v239, %v267
      %271 = vst.msk [vmem:[%s170] sm:$0xff] %vm185, %v268
      %272 = vst.msk [vmem:[%s170 + $0x8] sm:$0xff] %vm185, %v269
      %vm273 = vcmask 59392
      %274 = vst.msk [vmem:[%s170 + $0x10] sm:$0x7] %vm273, %v270
      %p275 = scmp.lt.s32.totalorder %s14, 1
      %s276 = scalar_select %p275, %s14, 1
      %s277 = smul.addr %s276, 3
      %s278 = smul.addr %s277, 8
      %s279 = scalar_lea.vmem %s3, %s278
      // Predicated region
      $region33: #{tpu_custom_call.1} parent=31 // pred_check
        %p280 = pneg %p100
      $region34: #{tpu_custom_call.1} parent=31 // pred_check_branch
        %282 = sbr.rel (%p280) target = $region36
      $region35: #{tpu_custom_call.1} parent=31 // pred_region
        _
      $region36: #{tpu_custom_call.1} parent=31 // pred_fallthru
        _
    $region32: #{tpu_custom_call.1} parent=5 // pred_fallthru
      _
    %p283 = scmp.le.s32.totalorder 2, %s9
    // Predicated region
    $region37: #{tpu_custom_call.1} parent=5 // pred_check
      %p284 = pneg %p283
    $region38: #{tpu_custom_call.1} parent=5 // pred_check_branch
      %286 = sbr.rel (%p284) target = $region40
    $region39: #{tpu_custom_call.1} parent=5 // pred_region
      %s287 = ssub.s32 %s9, 2
      // Predicated region
      $region41: #{tpu_custom_call.1} parent=39 // pred_check
        %p288 = pneg %p106
      $region42: #{tpu_custom_call.1} parent=39 // pred_check_branch
        %290 = sbr.rel (%p288) target = $region44
      $region43: #{tpu_custom_call.1} parent=39 // pred_region
        %p291 = scmp.lt.s32.totalorder %s15, 1
        %s292 = scalar_select %p291, %s15, 1
        %s293 = smul.addr %s292, 3
        %s294 = smul.addr %s293, 8
        %s295 = scalar_lea.vmem %s3, %s294
      $region44: #{tpu_custom_call.1} parent=39 // pred_fallthru
        _
    $region40: #{tpu_custom_call.1} parent=5 // pred_fallthru
      _
  $region6: #{tpu_custom_call.1} parent=0 // loop_footer
    %s13 = sadd.s32 1, %s9
  $region7: #{tpu_custom_call.1} parent=0 // loop_footer_branch
    %8 = sbr.rel target = $region3
  $region8: #{tpu_custom_call.1} parent=0 // loop_exit
    _

</llo_original>
